<compile_context>
chip_gen: v6e
topology: v6e:2x2x1
jax: 0.10.0
libtpu: 0.0.40
codegen_flags: <defaults>
</compile_context>

<pallas_src>
import jax
import jax.numpy as jnp
from jax.experimental import pallas as pl
from jax.experimental.pallas import tpu as pltpu

# ---------------- config (small, consistent with the module) ----------------
B = 8              # batch (fills the 8 f32 sublanes of a vreg)
S = 8              # sequence length
D_IN = 16          # raw state feature dim (input to seq_model stand-in)
K_SEQ = S * D_IN   # 128 -> lane-dense contraction dim for the fused pool+matmul
SEQ_OUT = 48       # seq_model stand-in output dim
ACTION_DIM = 16    # action dim; SEQ_OUT + ACTION_DIM == c_layers[0]
C_LAYERS = (64, 32)        # args.c_layers = "64,32"
H1 = C_LAYERS[1]
Q_OUT = 1                  # parse_layers output_size = 1
LANES = 128

# --- packed-parameter slab row layout (all starts 8-aligned, 128 lanes wide) ---
R_WSEQT = 0        # (K_SEQ, LANES)  w_seq tiled S times, each /S     rows   0..127
R_BSEQ = 128       # (8, LANES)      b_seq replicated on 8 sublanes   rows 128..135
R_W1S = 136        # (128, LANES)    W1[:48] in rows 0..47, rest 0    rows 136..263
R_W1A = 264        # (16, LANES)     W1[48:64]                        rows 264..279
R_B1 = 280         # (8, LANES)      b1 replicated on 8 sublanes      rows 280..287
R_W2R = 288        # (8, LANES)      w2^T replicated on 8 sublanes    rows 288..295
R_B2 = 296         # (8, LANES)      b2 scalar replicated everywhere  rows 296..303
SLAB_ROWS = 304
# slab = 304*128*4 B ~= 152 KiB -> far below any scoped-VMEM limit on v5e/v6e/v7x.


def _softq_kernel(state_ref, action_ref, slab_ref, q_ref):
    # ---- seq_model stand-in, pool fused into the matmul ----
    # state_ref is (B, S*D_IN) = (8, 128); w_seq tiled S times (pre-scaled by 1/S)
    # so one dense K=128 MXU pass == mean-pool -> Linear.  Lanes 48:128 of the
    # weight/bias blocks are zero, so s_feat tail lanes are tanh(0) = 0.
    w_seqt = slab_ref[R_WSEQT:R_WSEQT + K_SEQ, :]                 # (128, 128)
    b_seq = slab_ref[R_BSEQ:R_BSEQ + B, :]                        # (8, 128)
    s_feat = jnp.tanh(
        jnp.dot(state_ref[...], w_seqt, preferred_element_type=jnp.float32) + b_seq)

    # ---- softq layer 1: cat([s_feat, action]) @ W1 + b1 as a split matmul ----
    w1_s = slab_ref[R_W1S:R_W1S + LANES, :]                       # (128, 128), rows 48: zero
    w1_a = slab_ref[R_W1A:R_W1A + ACTION_DIM, :]                  # (16, 128)
    b1 = slab_ref[R_B1:R_B1 + B, :]                               # (8, 128)
    h1 = (jnp.dot(s_feat, w1_s, preferred_element_type=jnp.float32)
          + jnp.dot(action_ref[...], w1_a, preferred_element_type=jnp.float32)
          + b1)
    h1 = jnp.maximum(h1, 0.0)      # ReLU (args.c_act default); Dropout = identity
    # h1 tail lanes 32:128 are relu(0 + 0) = 0.

    # ---- softq layer 2: Linear(32, 1) on VPU + XLU (no degenerate MXU pass) ----
    w2_rep = slab_ref[R_W2R:R_W2R + B, :]                         # (8, 128) w2^T replicated
    b2_rep = slab_ref[R_B2:R_B2 + B, :]                           # (8, 128) b2 everywhere
    q = jnp.sum(h1 * w2_rep, axis=-1, keepdims=True)              # (B, 1) lane reduce
    # lane-dense (B, 128) store (unmasked vst); every lane holds the same q value.
    q_ref[...] = (jnp.broadcast_to(q, (B, LANES)) + b2_rep).astype(q_ref.dtype)


def softq_forward(state, action, slab):
    """state: (B, S, D_IN), action: (B, ACTION_DIM), slab: packed params.
    Returns q: (B, 1)."""
    b, s, d = state.shape
    assert (b, s, d) == (B, S, D_IN) and action.shape == (B, ACTION_DIM)
    state_flat = state.reshape(b, s * d)          # free metadata reshape -> (8, 128)
    vmem = pl.BlockSpec(memory_space=pltpu.MemorySpace.VMEM)
    q128 = pl.pallas_call(
        _softq_kernel,
        out_shape=jax.ShapeDtypeStruct((b, LANES), jnp.float32),
        in_specs=[vmem, vmem, vmem],
        out_specs=vmem,
    )(state_flat, action, slab)
    return q128[:, :Q_OUT]


def init_params(key):
    """Deterministic init; weights stored as (in, out), biases (1, out)."""
    ks = jax.random.split(key, 6)

    def lin(kw, kb, fan_in, fan_out):
        bound = 1.0 / jnp.sqrt(jnp.float32(fan_in))
        w = jax.random.uniform(kw, (fan_in, fan_out), jnp.float32, -bound, bound)
        b = jax.random.uniform(kb, (1, fan_out), jnp.float32, -bound, bound)
        return w, b

    p = {}
    p["w_seq"], p["b_seq"] = lin(ks[0], ks[1], D_IN, SEQ_OUT)        # seq_model stand-in
    p["w1"], p["b1"] = lin(ks[2], ks[3], C_LAYERS[0], C_LAYERS[1])   # softq Linear 64->32
    p["w2"], p["b2"] = lin(ks[4], ks[5], C_LAYERS[1], Q_OUT)         # softq Linear 32->1
    return p


def pack_params(p):
    """Pack all weights/biases into one (SLAB_ROWS, 128) f32 buffer (single DMA).

    - w_seq is tiled S times (each copy / S) so the mean-pool fuses into one
      K=128 matmul against the flattened state.
    - W1 is pre-split into its state / action row blocks (no concat in-kernel).
    - all biases and w2^T are replicated across 8 sublanes (whole-vreg VPU adds).
    - every block is zero-padded to the full 128 lanes; padded lanes MUST stay
      zero so tanh(0)=0 / relu(0)=0 keep the padded activation lanes inert.
    """
    slab = jnp.zeros((SLAB_ROWS, LANES), jnp.float32)
    w_seq_tiled = jnp.tile(p["w_seq"] / S, (S, 1))                         # (128, 48)
    slab = slab.at[R_WSEQT:R_WSEQT + K_SEQ, 0:SEQ_OUT].set(w_seq_tiled)
    slab = slab.at[R_BSEQ:R_BSEQ + 8, 0:SEQ_OUT].set(jnp.tile(p["b_seq"], (8, 1)))
    slab = slab.at[R_W1S:R_W1S + SEQ_OUT, 0:H1].set(p["w1"][:SEQ_OUT])
    slab = slab.at[R_W1A:R_W1A + ACTION_DIM, 0:H1].set(p["w1"][SEQ_OUT:])
    slab = slab.at[R_B1:R_B1 + 8, 0:H1].set(jnp.tile(p["b1"], (8, 1)))
    slab = slab.at[R_W2R:R_W2R + 8, 0:H1].set(jnp.tile(p["w2"].T, (8, 1)))
    slab = slab.at[R_B2:R_B2 + 8, :].set(jnp.full((8, LANES), p["b2"][0, 0]))
    return slab


def softq_forward_ref(state, action, p):
    """Pure-JAX reference mirroring the PyTorch module."""
    pooled = jnp.mean(state, axis=1)
    s_feat = jnp.tanh(pooled @ p["w_seq"] + p["b_seq"])
    x = jnp.concatenate([s_feat, action], axis=1)
    h1 = jnp.maximum(x @ p["w1"] + p["b1"], 0.0)
    return h1 @ p["w2"] + p["b2"]


if __name__ == "__main__":
    key = jax.random.PRNGKey(0)
    k_state, k_action, k_params = jax.random.split(key, 3)
    state = jax.random.normal(k_state, (B, S, D_IN), dtype=jnp.float32)
    action = jax.random.normal(k_action, (B, ACTION_DIM), dtype=jnp.float32)
    params = init_params(k_params)
    slab = pack_params(params)

    q = jax.block_until_ready(softq_forward(state, action, slab))

    q_ref = softq_forward_ref(state, action, params)
    assert q.shape == (B, Q_OUT)
    assert jnp.allclose(q, q_ref, atol=1e-4, rtol=1e-4), (
        f"max abs err {jnp.max(jnp.abs(q - q_ref))}")

    print("KERNEL_OK")
</pallas_src>

<mosaic_0001>
module attributes {stable_mosaic.version = 11 : i64} {
  func.func @_softq_kernel(%arg0: memref<8x128xf32, #tpu.memory_space<vmem>>, %arg1: memref<8x16xf32, #tpu.memory_space<vmem>>, %arg2: memref<304x128xf32, #tpu.memory_space<vmem>>, %arg3: memref<8x128xf32, #tpu.memory_space<vmem>>) attributes {dimension_semantics = [], scalar_prefetch = 0 : i64, scratch_operands = 0 : i64, tpu.core_type = #tpu.core_type<tc>} {
    %c0 = arith.constant 0 : index
    %c0_0 = arith.constant 0 : index
    %0 = vector.load %arg2[%c0, %c0_0] : memref<304x128xf32, #tpu.memory_space<vmem>>, vector<128x128xf32>
    %c128 = arith.constant 128 : index
    %c0_1 = arith.constant 0 : index
    %1 = vector.load %arg2[%c128, %c0_1] : memref<304x128xf32, #tpu.memory_space<vmem>>, vector<8x128xf32>
    %c0_2 = arith.constant 0 : index
    %c0_3 = arith.constant 0 : index
    %2 = vector.load %arg0[%c0_2, %c0_3] : memref<8x128xf32, #tpu.memory_space<vmem>>, vector<8x128xf32>
    %cst = arith.constant dense<0.000000e+00> : vector<8x128xf32>
    %3 = tpu.matmul %2, %0, %cst {dimension_numbers = #tpu.dot_dimension_numbers<[1], [0], [0], [1], [0, 0, 1, 1], [], []>} : vector<8x128xf32>, vector<128x128xf32>, vector<8x128xf32> -> vector<8x128xf32>
    %4 = arith.addf %3, %1 : vector<8x128xf32>
    %5 = math.tanh %4 : vector<8x128xf32>
    %c136 = arith.constant 136 : index
    %c0_4 = arith.constant 0 : index
    %6 = vector.load %arg2[%c136, %c0_4] : memref<304x128xf32, #tpu.memory_space<vmem>>, vector<128x128xf32>
    %c264 = arith.constant 264 : index
    %c0_5 = arith.constant 0 : index
    %7 = vector.load %arg2[%c264, %c0_5] : memref<304x128xf32, #tpu.memory_space<vmem>>, vector<16x128xf32>
    %c280 = arith.constant 280 : index
    %c0_6 = arith.constant 0 : index
    %8 = vector.load %arg2[%c280, %c0_6] : memref<304x128xf32, #tpu.memory_space<vmem>>, vector<8x128xf32>
    %cst_7 = arith.constant dense<0.000000e+00> : vector<8x128xf32>
    %9 = tpu.matmul %5, %6, %cst_7 {dimension_numbers = #tpu.dot_dimension_numbers<[1], [0], [0], [1], [0, 0, 1, 1], [], []>} : vector<8x128xf32>, vector<128x128xf32>, vector<8x128xf32> -> vector<8x128xf32>
    %c0_8 = arith.constant 0 : index
    %c0_9 = arith.constant 0 : index
    %10 = vector.load %arg1[%c0_8, %c0_9] : memref<8x16xf32, #tpu.memory_space<vmem>>, vector<8x16xf32>
    %cst_10 = arith.constant dense<0.000000e+00> : vector<8x128xf32>
    %11 = tpu.matmul %10, %7, %cst_10 {dimension_numbers = #tpu.dot_dimension_numbers<[1], [0], [0], [1], [0, 0, 1, 1], [], []>} : vector<8x16xf32>, vector<16x128xf32>, vector<8x128xf32> -> vector<8x128xf32>
    %12 = arith.addf %9, %11 : vector<8x128xf32>
    %13 = arith.addf %12, %8 : vector<8x128xf32>
    %cst_11 = arith.constant 0.000000e+00 : f32
    %14 = vector.broadcast %cst_11 : f32 to vector<8x128xf32>
    %15 = arith.maximumf %13, %14 : vector<8x128xf32>
    %c288 = arith.constant 288 : index
    %c0_12 = arith.constant 0 : index
    %16 = vector.load %arg2[%c288, %c0_12] : memref<304x128xf32, #tpu.memory_space<vmem>>, vector<8x128xf32>
    %c296 = arith.constant 296 : index
    %c0_13 = arith.constant 0 : index
    %17 = vector.load %arg2[%c296, %c0_13] : memref<304x128xf32, #tpu.memory_space<vmem>>, vector<8x128xf32>
    %18 = arith.mulf %15, %16 : vector<8x128xf32>
    %cst_14 = arith.constant dense<0.000000e+00> : vector<8xf32>
    %19 = vector.multi_reduction <add>, %18, %cst_14 [1] : vector<8x128xf32> to vector<8xf32>
    %20 = vector.shape_cast %19 : vector<8xf32> to vector<8x1xf32>
    %21 = vector.shape_cast %20 : vector<8x1xf32> to vector<8x1xf32>
    %22 = vector.broadcast %21 : vector<8x1xf32> to vector<8x128xf32>
    %23 = arith.addf %22, %17 : vector<8x128xf32>
    %c0_15 = arith.constant 0 : index
    %c0_16 = arith.constant 0 : index
    %24 = vector.load %arg3[%c0_15, %c0_16] : memref<8x128xf32, #tpu.memory_space<vmem>>, vector<8x128xf32>
    tpu.vector_store %arg3[%c0_15, %c0_16], %23 {strides = array<i32>} : memref<8x128xf32, #tpu.memory_space<vmem>>, vector<8x128xf32>,
    return
  }
}

</mosaic_0001>

<llo_original>
// kernel: tpu_custom_call.1
$region0: #{tpu_custom_call.1}
  #allocation0 [shape = 'u32[]', space=smem, size = 0x4, offset = 0x4, fixed_abs, tag = 'smem constant byte address 0x4 - core index']
  #allocation1 [shape = 'u32[144,128]{1,0:T(1,128)}', space=vmem, size = 0x12000, scoped, tag = 'internal scratch']
  %s0 = inlined_call_operand.hbm [shape: f32[8,128], index: 0, kind: input, shape index: {}]
  %s1 = inlined_call_operand.hbm [shape: f32[8,16], index: 1, kind: input, shape index: {}]
  %s2 = inlined_call_operand.hbm [shape: f32[304,128], index: 2, kind: input, shape index: {}]
  %s3 = inlined_call_operand.hbm [shape: f32[8,128], index: 3, kind: output, shape index: {}]
  %s4 = sld [smem:[#allocation0]]
  $region34: #{tpu_custom_call.1} parent=0
    _
  %s6 = ssub.s32 1, %s4
  %s7 = scalar_select 0, %s6, %s4
  $region1: #{tpu_custom_call.1} parent=0
    #allocation2 [shape = 'u8[4096]{0}', space=vmem, size = 0x1000, scoped, tag = 'input window, operand 0, single buffered']
    #allocation3 [shape = 's32[1]{0}', space=sflag, size = 0x4, scoped, tag = 'scoped memory for tpu_custom_call.1']
    #allocation4 [shape = 's32[1]{0}', space=sflag, size = 0x4, scoped, tag = 'scoped memory for tpu_custom_call.1']
    #allocation5 [shape = 'u8[4096]{0}', space=vmem, size = 0x1000, scoped, tag = 'input window, operand 1, single buffered']
    #allocation6 [shape = 's32[1]{0}', space=sflag, size = 0x4, scoped, tag = 'scoped memory for tpu_custom_call.1']
    #allocation7 [shape = 'u8[155648]{0}', space=vmem, size = 0x26000, scoped, tag = 'input window, operand 2, single buffered']
    #allocation8 [shape = 'u8[4096]{0}', space=vmem, size = 0x1000, scoped, tag = 'output window, operand 0, single buffered']
    %8 = vsyncpa [#allocation3], 0
    %9 = vsyncpa [#allocation6], 0
    %10 = vsyncpa [#allocation4], 0
    // Predicated region
    $region2: #{tpu_custom_call.1} parent=1 // pred_check
      _
    $region3: #{tpu_custom_call.1} parent=1 // pred_check_branch
      %12 = sbr.rel (0) target = $region5
    $region4: #{tpu_custom_call.1} parent=1 // pred_region
      %s14 = ssub.s32 128, 128
      %15 = vsyncadd [#allocation3], %s14
      %s17 = sshll.u32 [#allocation2], 4
      %s18 = int_to_ptr.vmem [resolvable:$true] %s17
      %20 = dma.hbm_to_vmem [thread:$0]  %s0, 128, %s18, [#allocation3]
    $region5: #{tpu_custom_call.1} parent=1 // pred_fallthru
      _
    // Predicated region
    $region6: #{tpu_custom_call.1} parent=1 // pred_check
      _
    $region7: #{tpu_custom_call.1} parent=1 // pred_check_branch
      %22 = sbr.rel (0) target = $region9
    $region8: #{tpu_custom_call.1} parent=1 // pred_region
      %s24 = ssub.s32 128, 128
      %25 = vsyncadd [#allocation6], %s24
      %s27 = sshll.u32 [#allocation5], 4
      %s28 = int_to_ptr.vmem [resolvable:$true] %s27
      %30 = dma.hbm_to_vmem [thread:$0]  %s1, 128, %s28, [#allocation6]
    $region9: #{tpu_custom_call.1} parent=1 // pred_fallthru
      _
    // Predicated region
    $region10: #{tpu_custom_call.1} parent=1 // pred_check
      _
    $region11: #{tpu_custom_call.1} parent=1 // pred_check_branch
      %32 = sbr.rel (0) target = $region13
    $region12: #{tpu_custom_call.1} parent=1 // pred_region
      %s34 = ssub.s32 4864, 4864
      %35 = vsyncadd [#allocation6], %s34
      %s36 = sshll.u32 [#allocation7], 4
      %s37 = int_to_ptr.vmem [resolvable:$true] %s36
      %42 = dma.hbm_to_vmem [thread:$0]  %s2, 4864, %s37, [#allocation6], 128, 128, 8
    $region13: #{tpu_custom_call.1} parent=1 // pred_fallthru
      _
    // Predicated region
    $region14: #{tpu_custom_call.1} parent=1 // pred_check
      _
    $region15: #{tpu_custom_call.1} parent=1 // pred_check_branch
      %44 = sbr.rel (0) target = $region17
    $region16: #{tpu_custom_call.1} parent=1 // pred_region
      %45 = dma.done [#allocation3], 128
    $region17: #{tpu_custom_call.1} parent=1 // pred_fallthru
      _
    // Predicated region
    $region18: #{tpu_custom_call.1} parent=1 // pred_check
      _
    $region19: #{tpu_custom_call.1} parent=1 // pred_check_branch
      %47 = sbr.rel (0) target = $region21
    $region20: #{tpu_custom_call.1} parent=1 // pred_region
      %48 = dma.done [#allocation6], 128
    $region21: #{tpu_custom_call.1} parent=1 // pred_fallthru
      _
    // Predicated region
    $region22: #{tpu_custom_call.1} parent=1 // pred_check
      _
    $region23: #{tpu_custom_call.1} parent=1 // pred_check_branch
      %50 = sbr.rel (0) target = $region25
    $region24: #{tpu_custom_call.1} parent=1 // pred_region
      %51 = dma.done [#allocation6], 4864
    $region25: #{tpu_custom_call.1} parent=1 // pred_fallthru
      _
    %v52 = vld [vmem:[#allocation7] sm:$0xff]
    %v53 = vld [vmem:[#allocation7 + $0x8] sm:$0xff]
    %v54 = vld [vmem:[#allocation7 + $0x10] sm:$0xff]
    %v55 = vld [vmem:[#allocation7 + $0x18] sm:$0xff]
    %v56 = vld [vmem:[#allocation7 + $0x20] sm:$0xff]
    %v57 = vld [vmem:[#allocation7 + $0x28] sm:$0xff]
    %v58 = vld [vmem:[#allocation7 + $0x30] sm:$0xff]
    %v59 = vld [vmem:[#allocation7 + $0x38] sm:$0xff]
    %v60 = vld [vmem:[#allocation7 + $0x40] sm:$0xff]
    %v61 = vld [vmem:[#allocation7 + $0x48] sm:$0xff]
    %v62 = vld [vmem:[#allocation7 + $0x50] sm:$0xff]
    %v63 = vld [vmem:[#allocation7 + $0x58] sm:$0xff]
    %v64 = vld [vmem:[#allocation7 + $0x60] sm:$0xff]
    %v65 = vld [vmem:[#allocation7 + $0x68] sm:$0xff]
    %v66 = vld [vmem:[#allocation7 + $0x70] sm:$0xff]
    %v67 = vld [vmem:[#allocation7 + $0x78] sm:$0xff]
    %v68 = vld [vmem:[#allocation7 + $0x80] sm:$0xff]
    %v69 = vld [vmem:[#allocation2] sm:$0xff]
    %70 = vmatprep.subr.mxu0 0.0
    %71 = vmatpush1.msra.mxu0 %v67
    %72 = vmatprep.subr.mxu0 0.0
    %73 = vmatpush1.msra.mxu0 %v66
    %74 = vmatprep.subr.mxu0 0.0
    %75 = vmatpush1.msra.mxu0 %v65
    %76 = vmatprep.subr.mxu0 0.0
    %77 = vmatpush1.msra.mxu0 %v64
    %78 = vmatprep.subr.mxu0 0.0
    %79 = vmatpush1.msra.mxu0 %v63
    %80 = vmatprep.subr.mxu0 0.0
    %81 = vmatpush1.msra.mxu0 %v62
    %82 = vmatprep.subr.mxu0 0.0
    %83 = vmatpush1.msra.mxu0 %v61
    %84 = vmatprep.subr.mxu0 0.0
    %85 = vmatpush1.msra.mxu0 %v60
    %86 = vmatprep.subr.mxu0 0.0
    %87 = vmatpush1.msra.mxu0 %v59
    %88 = vmatprep.subr.mxu0 0.0
    %89 = vmatpush1.msra.mxu0 %v58
    %90 = vmatprep.subr.mxu0 0.0
    %91 = vmatpush1.msra.mxu0 %v57
    %92 = vmatprep.subr.mxu0 0.0
    %93 = vmatpush1.msra.mxu0 %v56
    %94 = vmatprep.subr.mxu0 0.0
    %95 = vmatpush1.msra.mxu0 %v55
    %96 = vmatprep.subr.mxu0 0.0
    %97 = vmatpush1.msra.mxu0 %v54
    %98 = vmatprep.subr.mxu0 0.0
    %99 = vmatpush1.msra.mxu0 %v53
    %100 = vmatprep.subr.mxu0 0.0
    %101 = vmatpush1.msra.mxu0 %v52
    %102 = vmatprep.subr.mxu0 0.0
    %103 = vmatpush2.msra.mxu0 0.0
    %104 = vmatprep.subr.mxu0 0.0
    %105 = vmatpush2.msra.mxu0 0.0
    %106 = vmatprep.subr.mxu0 0.0
    %107 = vmatpush2.msra.mxu0 0.0
    %108 = vmatprep.subr.mxu0 0.0
    %109 = vmatpush2.msra.mxu0 0.0
    %110 = vmatprep.subr.mxu0 0.0
    %111 = vmatpush2.msra.mxu0 0.0
    %112 = vmatprep.subr.mxu0 0.0
    %113 = vmatpush2.msra.mxu0 0.0
    %114 = vmatprep.subr.mxu0 0.0
    %115 = vmatpush2.msra.mxu0 0.0
    %116 = vmatprep.subr.mxu0 0.0
    %117 = vmatpush2.msra.mxu0 0.0
    %118 = vmatprep.subr.mxu0 0.0
    %119 = vmatpush2.msra.mxu0 0.0
    %120 = vmatprep.subr.mxu0 0.0
    %121 = vmatpush2.msra.mxu0 0.0
    %122 = vmatprep.subr.mxu0 0.0
    %123 = vmatpush2.msra.mxu0 0.0
    %124 = vmatprep.subr.mxu0 0.0
    %125 = vmatpush2.msra.mxu0 0.0
    %126 = vmatprep.subr.mxu0 0.0
    %127 = vmatpush2.msra.mxu0 0.0
    %128 = vmatprep.subr.mxu0 0.0
    %129 = vmatpush2.msra.mxu0 0.0
    %130 = vmatprep.subr.mxu0 0.0
    %131 = vmatpush2.msra.mxu0 0.0
    %132 = vmatprep.subr.mxu0 0.0
    %133 = vmatpush2.msra.mxu0 0.0
    %134 = vmatprep.mubr.f32.mxu0 0.0
    %135 = vmatmul.mubr.f32.gmra.mxu0 %v69
    %v136 = vpop.f32.mrf.mxu0
    %v137 = vadd.f32 %v68, %v136
    %v138 = vpop.f32.mrf.mxu0
    %139 = vdwg.mxu0
    %v140 = vtanh.pop %v137
    %v141 = vld [vmem:[#allocation7 + $0x88] sm:$0xff]
    %v142 = vld [vmem:[#allocation7 + $0x90] sm:$0xff]
    %v143 = vld [vmem:[#allocation7 + $0x98] sm:$0xff]
    %v144 = vld [vmem:[#allocation7 + $0xa0] sm:$0xff]
    %v145 = vld [vmem:[#allocation7 + $0xa8] sm:$0xff]
    %v146 = vld [vmem:[#allocation7 + $0xb0] sm:$0xff]
    %v147 = vld [vmem:[#allocation7 + $0xb8] sm:$0xff]
    %v148 = vld [vmem:[#allocation7 + $0xc0] sm:$0xff]
    %v149 = vld [vmem:[#allocation7 + $0xc8] sm:$0xff]
    %v150 = vld [vmem:[#allocation7 + $0xd0] sm:$0xff]
    %v151 = vld [vmem:[#allocation7 + $0xd8] sm:$0xff]
    %v152 = vld [vmem:[#allocation7 + $0xe0] sm:$0xff]
    %v153 = vld [vmem:[#allocation7 + $0xe8] sm:$0xff]
    %v154 = vld [vmem:[#allocation7 + $0xf0] sm:$0xff]
    %v155 = vld [vmem:[#allocation7 + $0xf8] sm:$0xff]
    %v156 = vld [vmem:[#allocation7 + $0x100] sm:$0xff]
    %v157 = vld [vmem:[#allocation7 + $0x108] sm:$0xff]
    %v158 = vld [vmem:[#allocation7 + $0x110] sm:$0xff]
    %v159 = vld [vmem:[#allocation7 + $0x118] sm:$0xff]
    %v160 = vld [vmem:[#allocation5] sm:$0xff]
    %vm161 = vcmask 130048
    %v163 = vsel %vm161, %v160, 0
    %165 = vmatprep.subr.mxu0 0.0
    %166 = vmatpush1.msra.mxu0 0.0
    %167 = vmatprep.subr.mxu0 0.0
    %168 = vmatpush1.msra.mxu0 0.0
    %169 = vmatprep.subr.mxu0 0.0
    %170 = vmatpush1.msra.mxu0 0.0
    %171 = vmatprep.subr.mxu0 0.0
    %172 = vmatpush1.msra.mxu0 0.0
    %173 = vmatprep.subr.mxu0 0.0
    %174 = vmatpush1.msra.mxu0 0.0
    %175 = vmatprep.subr.mxu0 0.0
    %176 = vmatpush1.msra.mxu0 0.0
    %177 = vmatprep.subr.mxu0 0.0
    %178 = vmatpush1.msra.mxu0 0.0
    %179 = vmatprep.subr.mxu0 0.0
    %180 = vmatpush1.msra.mxu0 0.0
    %181 = vmatprep.subr.mxu0 0.0
    %182 = vmatpush1.msra.mxu0 0.0
    %183 = vmatprep.subr.mxu0 0.0
    %184 = vmatpush1.msra.mxu0 0.0
    %185 = vmatprep.subr.mxu0 0.0
    %186 = vmatpush1.msra.mxu0 0.0
    %187 = vmatprep.subr.mxu0 0.0
    %188 = vmatpush1.msra.mxu0 0.0
    %189 = vmatprep.subr.mxu0 0.0
    %190 = vmatpush1.msra.mxu0 0.0
    %191 = vmatprep.subr.mxu0 0.0
    %192 = vmatpush1.msra.mxu0 0.0
    %193 = vmatprep.subr.mxu0 0.0
    %194 = vmatpush1.msra.mxu0 %v158
    %195 = vmatprep.subr.mxu0 0.0
    %196 = vmatpush1.msra.mxu0 %v157
    %197 = vmatprep.subr.mxu0 0.0
    %198 = vmatpush2.msra.mxu0 0.0
    %199 = vmatprep.subr.mxu0 0.0
    %200 = vmatpush2.msra.mxu0 0.0
    %201 = vmatprep.subr.mxu0 0.0
    %202 = vmatpush2.msra.mxu0 0.0
    %203 = vmatprep.subr.mxu0 0.0
    %204 = vmatpush2.msra.mxu0 0.0
    %205 = vmatprep.subr.mxu0 0.0
    %206 = vmatpush2.msra.mxu0 0.0
    %207 = vmatprep.subr.mxu0 0.0
    %208 = vmatpush2.msra.mxu0 0.0
    %209 = vmatprep.subr.mxu0 0.0
    %210 = vmatpush2.msra.mxu0 0.0
    %211 = vmatprep.subr.mxu0 0.0
    %212 = vmatpush2.msra.mxu0 0.0
    %213 = vmatprep.subr.mxu0 0.0
    %214 = vmatpush2.msra.mxu0 0.0
    %215 = vmatprep.subr.mxu0 0.0
    %216 = vmatpush2.msra.mxu0 0.0
    %217 = vmatprep.subr.mxu0 0.0
    %218 = vmatpush2.msra.mxu0 0.0
    %219 = vmatprep.subr.mxu0 0.0
    %220 = vmatpush2.msra.mxu0 0.0
    %221 = vmatprep.subr.mxu0 0.0
    %222 = vmatpush2.msra.mxu0 0.0
    %223 = vmatprep.subr.mxu0 0.0
    %224 = vmatpush2.msra.mxu0 0.0
    %225 = vmatprep.subr.mxu0 0.0
    %226 = vmatpush2.msra.mxu0 0.0
    %227 = vmatprep.subr.mxu0 0.0
    %228 = vmatpush2.msra.mxu0 0.0
    %229 = vmatprep.mubr.f32.mxu0 0.0
    %230 = vmatmul.mubr.f32.gmra.mxu0 %v163
    %v231 = vpop.f32.mrf.mxu0
    %v232 = vadd.f32 0.0, %v231
    %v233 = vpop.f32.mrf.mxu0
    %234 = vdwg.mxu0
    %235 = vmatprep.subr.mxu0 0.0
    %236 = vmatpush1.msra.mxu0 %v156
    %237 = vmatprep.subr.mxu0 0.0
    %238 = vmatpush1.msra.mxu0 %v155
    %239 = vmatprep.subr.mxu0 0.0
    %240 = vmatpush1.msra.mxu0 %v154
    %241 = vmatprep.subr.mxu0 0.0
    %242 = vmatpush1.msra.mxu0 %v153
    %243 = vmatprep.subr.mxu0 0.0
    %244 = vmatpush1.msra.mxu0 %v152
    %245 = vmatprep.subr.mxu0 0.0
    %246 = vmatpush1.msra.mxu0 %v151
    %247 = vmatprep.subr.mxu0 0.0
    %248 = vmatpush1.msra.mxu0 %v150
    %249 = vmatprep.subr.mxu0 0.0
    %250 = vmatpush1.msra.mxu0 %v149
    %251 = vmatprep.subr.mxu0 0.0
    %252 = vmatpush1.msra.mxu0 %v148
    %253 = vmatprep.subr.mxu0 0.0
    %254 = vmatpush1.msra.mxu0 %v147
    %255 = vmatprep.subr.mxu0 0.0
    %256 = vmatpush1.msra.mxu0 %v146
    %257 = vmatprep.subr.mxu0 0.0
    %258 = vmatpush1.msra.mxu0 %v145
    %259 = vmatprep.subr.mxu0 0.0
    %260 = vmatpush1.msra.mxu0 %v144
    %261 = vmatprep.subr.mxu0 0.0
    %262 = vmatpush1.msra.mxu0 %v143
    %263 = vmatprep.subr.mxu0 0.0
    %264 = vmatpush1.msra.mxu0 %v142
    %265 = vmatprep.subr.mxu0 0.0
    %266 = vmatpush1.msra.mxu0 %v141
    %267 = vmatprep.subr.mxu0 0.0
    %268 = vmatpush2.msra.mxu0 0.0
    %269 = vmatprep.subr.mxu0 0.0
    %270 = vmatpush2.msra.mxu0 0.0
    %271 = vmatprep.subr.mxu0 0.0
    %272 = vmatpush2.msra.mxu0 0.0
    %273 = vmatprep.subr.mxu0 0.0
    %274 = vmatpush2.msra.mxu0 0.0
    %275 = vmatprep.subr.mxu0 0.0
    %276 = vmatpush2.msra.mxu0 0.0
    %277 = vmatprep.subr.mxu0 0.0
    %278 = vmatpush2.msra.mxu0 0.0
    %279 = vmatprep.subr.mxu0 0.0
    %280 = vmatpush2.msra.mxu0 0.0
    %281 = vmatprep.subr.mxu0 0.0
    %282 = vmatpush2.msra.mxu0 0.0
    %283 = vmatprep.subr.mxu0 0.0
    %284 = vmatpush2.msra.mxu0 0.0
    %285 = vmatprep.subr.mxu0 0.0
    %286 = vmatpush2.msra.mxu0 0.0
    %287 = vmatprep.subr.mxu0 0.0
    %288 = vmatpush2.msra.mxu0 0.0
    %289 = vmatprep.subr.mxu0 0.0
    %290 = vmatpush2.msra.mxu0 0.0
    %291 = vmatprep.subr.mxu0 0.0
    %292 = vmatpush2.msra.mxu0 0.0
    %293 = vmatprep.subr.mxu0 0.0
    %294 = vmatpush2.msra.mxu0 0.0
    %295 = vmatprep.subr.mxu0 0.0
    %296 = vmatpush2.msra.mxu0 0.0
    %297 = vmatprep.subr.mxu0 0.0
    %298 = vmatpush2.msra.mxu0 0.0
    %299 = vmatprep.mubr.f32.mxu0 0.0
    %300 = vmatmul.mubr.f32.gmra.mxu0 %v140
    %v301 = vpop.f32.mrf.mxu0
    %v302 = vadd.f32 %v232, %v301
    %v303 = vpop.f32.mrf.mxu0
    %304 = vdwg.mxu0
    %v305 = vadd.f32 %v302, %v159
    %v306 = vmax.f32 %v305, 0.0
    %v307 = vld [vmem:[#allocation7 + $0x120] sm:$0xff]
    %v308 = vld [vmem:[#allocation7 + $0x128] sm:$0xff]
    %v309 = vmul.f32 %v306, %v307
    %310 = vadd.xlane.f32.xlu0 %v309
    %v311 = vpop.xlane.xlu0 %310
    %v312 = vadd.f32 %v311, %v308
    %313 = vst [vmem:[#allocation8] sm:$0xff] %v312
    // Predicated region
    $region26: #{tpu_custom_call.1} parent=1 // pred_check
      _
    $region27: #{tpu_custom_call.1} parent=1 // pred_check_branch
      %315 = sbr.rel (0) target = $region29
    $region28: #{tpu_custom_call.1} parent=1 // pred_region
      %s317 = ssub.s32 128, 128
      %318 = vsyncadd [#allocation4], %s317
      %s320 = sshll.u32 [#allocation8], 4
      %s321 = int_to_ptr.vmem [resolvable:$true] %s320
      %323 = dma.vmem_to_hbm [thread:$0]  %s321, 128, %s3, [#allocation4]
    $region29: #{tpu_custom_call.1} parent=1 // pred_fallthru
      _
    // Predicated region
    $region30: #{tpu_custom_call.1} parent=1 // pred_check
      _
    $region31: #{tpu_custom_call.1} parent=1 // pred_check_branch
      %325 = sbr.rel (0) target = $region33
    $region32: #{tpu_custom_call.1} parent=1 // pred_region
      %326 = dma.done [#allocation4], 128
    $region33: #{tpu_custom_call.1} parent=1 // pred_fallthru
      _
    %327 = vsyncpa [#allocation3], 1
    %328 = vsyncpa [#allocation6], 1
    %329 = vsyncpa [#allocation4], 1

</llo_original>
